<compile_context>
chip_gen: v7x
topology: tpu7x:2x2x1
jax: 0.10.0
libtpu: 0.0.40
codegen_flags: <defaults>
</compile_context>

<pallas_src>
import jax
import jax.numpy as jnp
import numpy as np
from jax import lax
from jax.experimental import pallas as pl
from jax.experimental.pallas import tpu as pltpu


# ----------------------------------------------------------------------------
# Fused kernel: one grid step = one batch element.
#   1) 1x1 conv as an MXU matmul (BN scale pre-folded into the weight)
#   2) pointwise result written into a VMEM scratch with a 1-row zero halo
#      (H direction only; fully aligned interior store)
#   3) depthwise 3x3 via per-kx weighted sums + XLU rolls along W, bias folded
#      into the accumulator init, ReLU, strip-mined over H
# ----------------------------------------------------------------------------
def _lightconv3x3_kernel(x_ref, w_ref, dw_ref, b_ref, o_ref, pw_ref):
    H, W, Cout = o_ref.shape

    # (1) pointwise 1x1 conv on the MXU; BN scale already folded into w_ref.
    y = jnp.dot(x_ref[...], w_ref[...], preferred_element_type=jnp.float32)

    # (2) H-haloed pointwise activation in VMEM. Only the two border rows are
    #     zeroed per step (NOT gated on program_id: under megacore each core
    #     sees a disjoint program_id range).
    pw_ref[0, :, :] = jnp.zeros((W, Cout), jnp.float32)
    pw_ref[H + 1, :, :] = jnp.zeros((W, Cout), jnp.float32)
    pw_ref[1:H + 1, :, :] = y.reshape(H, W, Cout)

    # Loop-invariant values hoisted out of the strip loop.
    taps = dw_ref[...]                      # (9, Cout)
    t = [taps[k] for k in range(9)]         # per-tap (Cout,) rows
    bias = b_ref[...]                       # (1, Cout)
    col = lax.broadcasted_iota(jnp.int32, (W, 1), 0)
    west_ok = col >= 1                      # column w-1 exists
    east_ok = col <= W - 2                  # column w+1 exists

    # (3) depthwise 3x3 + bias + ReLU, strip-mined over H.
    strip = 8 if H % 8 == 0 else (4 if H % 4 == 0 else (2 if H % 2 == 0 else 1))
    n_strips = H // strip

    @pl.loop(0, n_strips)
    def _(si):
        h0 = pl.multiple_of(si * strip, strip)
        # scratch rows h0+ky .. h0+ky+strip-1 correspond to pw rows h-1+ky.
        s0 = pw_ref[pl.ds(h0, strip), :, :]
        s1 = pw_ref[pl.ds(h0 + 1, strip), :, :]
        s2 = pw_ref[pl.ds(h0 + 2, strip), :, :]
        # Per-kx-column weighted sums over the three ky taps.
        left = s0 * t[0] + s1 * t[3] + s2 * t[6]          # needs value at w-1
        center = bias + s0 * t[1] + s1 * t[4] + s2 * t[7]
        right = s0 * t[2] + s1 * t[5] + s2 * t[8]         # needs value at w+1
        # +/-1 W shift on the XLU; mask the wrapped border column.
        west = pltpu.roll(left, shift=1, axis=1)          # west[w]  = left[w-1]
        east = pltpu.roll(right, shift=W - 1, axis=1)     # east[w]  = right[w+1]
        out = center + jnp.where(west_ok, west, 0.0) + jnp.where(east_ok, east, 0.0)
        o_ref[pl.ds(h0, strip), :, :] = jnp.maximum(out, 0.0).astype(o_ref.dtype)


def lightconv3x3_nhwc(x_nhwc, pw_w, dw_w, bn_scale, bn_bias, *,
                      matmul_dtype=None, out_dtype=None):
    """Fused LightConv3x3 forward.

    x_nhwc:   [N, H, W, Cin]  activations (channels-last)
    pw_w:     [Cin, Cout]     1x1 conv weight
    dw_w:     [3, 3, Cout]    depthwise 3x3 taps (per output channel)
    bn_scale: [Cout]          gamma / sqrt(running_var + eps)
    bn_bias:  [Cout]          beta - running_mean * bn_scale
    matmul_dtype: set to jnp.bfloat16 on v6e/v7x to halve matmul HBM traffic.
    out_dtype:    defaults to float32; bf16 halves output HBM bytes downstream.
    """
    N, H, W, Cin = x_nhwc.shape
    Cout = pw_w.shape[1]
    if out_dtype is None:
        out_dtype = jnp.float32

    # Fold the BN scale into the pointwise weight: the depthwise conv is a
    # per-channel linear map (groups == Cout), so the per-channel scale
    # commutes through it.
    w_folded = pw_w * bn_scale[None, :]

    if matmul_dtype is not None:
        x_nhwc = x_nhwc.astype(matmul_dtype)
        w_folded = w_folded.astype(matmul_dtype)

    # Flatten spatial dims at the HBM boundary (free, contiguous) so the
    # kernel's matmul LHS is a straight lane-tiled load.
    x2d = x_nhwc.reshape(N, H * W, Cin)
    dw_flat = dw_w.reshape(9, Cout).astype(jnp.float32)
    bias2d = bn_bias.reshape(1, Cout).astype(jnp.float32)

    return pl.pallas_call(
        _lightconv3x3_kernel,
        out_shape=jax.ShapeDtypeStruct((N, H, W, Cout), out_dtype),
        grid=(N,),
        in_specs=[
            pl.BlockSpec((None, H * W, Cin), lambda n: (n, 0, 0)),
            pl.BlockSpec((Cin, Cout), lambda n: (0, 0)),
            pl.BlockSpec((9, Cout), lambda n: (0, 0)),
            pl.BlockSpec((1, Cout), lambda n: (0, 0)),
        ],
        out_specs=pl.BlockSpec((None, H, W, Cout), lambda n: (n, 0, 0, 0)),
        scratch_shapes=[pltpu.VMEM((H + 2, W, Cout), jnp.float32)],
        compiler_params=pltpu.CompilerParams(
            dimension_semantics=("parallel",)),
    )(x2d, w_folded, dw_flat, bias2d)


# ----------------------------------------------------------------------------
# PyTorch-layout entry point (NCHW activations, OIHW / O1HW weights).
# ----------------------------------------------------------------------------
def lightconv3x3_forward(x_nchw, conv1_w, conv2_w, gamma, beta, run_mean, run_var,
                         *, eps=1e-5, matmul_dtype=None, out_dtype=None):
    x = jnp.transpose(x_nchw, (0, 2, 3, 1))               # NCHW -> NHWC
    pw_w = jnp.transpose(conv1_w[:, :, 0, 0], (1, 0))     # (Cin, Cout)
    dw_w = jnp.transpose(conv2_w[:, 0, :, :], (1, 2, 0))  # (3, 3, Cout)
    scale = gamma / jnp.sqrt(run_var + eps)                # inference-mode BN
    bias = beta - run_mean * scale
    out = lightconv3x3_nhwc(x, pw_w, dw_w, scale, bias,
                            matmul_dtype=matmul_dtype, out_dtype=out_dtype)
    return jnp.transpose(out, (0, 3, 1, 2))                # NHWC -> NCHW


# ----------------------------------------------------------------------------
# Pure-JAX reference (same math, no Pallas) for correctness checks.
# ----------------------------------------------------------------------------
def reference_forward(x_nchw, conv1_w, conv2_w, gamma, beta, run_mean, run_var,
                      eps=1e-5):
    x = jnp.transpose(x_nchw, (0, 2, 3, 1))
    pw_w = jnp.transpose(conv1_w[:, :, 0, 0], (1, 0))
    dw_w = jnp.transpose(conv2_w[:, 0, :, :], (1, 2, 0))
    y = jnp.einsum("nhwc,cd->nhwd", x, pw_w)
    N, H, W, C = y.shape
    yp = jnp.pad(y, ((0, 0), (1, 1), (1, 1), (0, 0)))
    acc = jnp.zeros_like(y)
    for ky in range(3):
        for kx in range(3):
            acc = acc + yp[:, ky:ky + H, kx:kx + W, :] * dw_w[ky, kx]
    scale = gamma / jnp.sqrt(run_var + eps)
    out = jnp.maximum(acc * scale + (beta - run_mean * scale), 0.0)
    return jnp.transpose(out, (0, 3, 1, 2))


if __name__ == "__main__":
    key = jax.random.PRNGKey(0)
    k_x, k_w1, k_w2, k_g, k_b, k_m, k_v = jax.random.split(key, 7)

    # Cout=128 keeps output stores lane-dense; N=2 keeps v7x's two TCs balanced.
    N, Cin, Cout, H, W = 2, 32, 128, 16, 16
    x = jax.random.normal(k_x, (N, Cin, H, W), jnp.float32)               # NCHW
    conv1_w = 0.2 * jax.random.normal(k_w1, (Cout, Cin, 1, 1), jnp.float32)
    conv2_w = 0.2 * jax.random.normal(k_w2, (Cout, 1, 3, 3), jnp.float32)
    gamma = 1.0 + 0.1 * jax.random.normal(k_g, (Cout,), jnp.float32)
    beta = 0.1 * jax.random.normal(k_b, (Cout,), jnp.float32)
    run_mean = 0.05 * jax.random.normal(k_m, (Cout,), jnp.float32)
    run_var = 1.0 + 0.1 * jax.random.uniform(k_v, (Cout,), jnp.float32)

    ref = reference_forward(x, conv1_w, conv2_w, gamma, beta, run_mean, run_var)

    # f32 path (default): tight check against the pure-JAX reference.
    out = lightconv3x3_forward(x, conv1_w, conv2_w, gamma, beta, run_mean, run_var)
    out = jax.block_until_ready(out)
    assert out.shape == (N, Cout, H, W)
    np.testing.assert_allclose(np.asarray(out), np.asarray(ref), rtol=2e-2, atol=2e-2)

    # bf16-matmul path (recommended default on v6e/v7x): looser tolerance.
    out_bf16 = lightconv3x3_forward(x, conv1_w, conv2_w, gamma, beta, run_mean,
                                    run_var, matmul_dtype=jnp.bfloat16)
    out_bf16 = jax.block_until_ready(out_bf16)
    np.testing.assert_allclose(np.asarray(out_bf16), np.asarray(ref),
                               rtol=1e-1, atol=1e-1)

    print("KERNEL_OK")
</pallas_src>

<mosaic_0001>
module attributes {stable_mosaic.version = 11 : i64} {
  func.func @_lightconv3x3_kernel(%arg0: i32, %arg1: memref<1x256x32xf32, #tpu.memory_space<vmem>>, %arg2: memref<32x128xf32, #tpu.memory_space<vmem>>, %arg3: memref<9x128xf32, #tpu.memory_space<vmem>>, %arg4: memref<1x128xf32, #tpu.memory_space<vmem>>, %arg5: memref<1x16x16x128xf32, #tpu.memory_space<vmem>>, %arg6: memref<18x16x128xf32, #tpu.memory_space<vmem>>) attributes {dimension_semantics = [#tpu.dimension_semantics<parallel>], iteration_bounds = array<i64: 2>, scalar_prefetch = 0 : i64, scratch_operands = 1 : i64, tpu.core_type = #tpu.core_type<tc>, window_params = [{transform_indices = @transform_0, window_bounds = array<i64: 1, 256, 32>}, {pipeline_mode = #tpu.pipeline_mode<synchronous>, transform_indices = @transform_1, window_bounds = array<i64: 32, 128>}, {pipeline_mode = #tpu.pipeline_mode<synchronous>, transform_indices = @transform_2, window_bounds = array<i64: 9, 128>}, {pipeline_mode = #tpu.pipeline_mode<synchronous>, transform_indices = @transform_3, window_bounds = array<i64: 1, 128>}, {transform_indices = @transform_4, window_bounds = array<i64: 1, 16, 16, 128>}]} {
    %c0 = arith.constant 0 : index
    %c0_0 = arith.constant 0 : index
    %c0_1 = arith.constant 0 : index
    %0 = vector.load %arg1[%c0, %c0_0, %c0_1] : memref<1x256x32xf32, #tpu.memory_space<vmem>>, vector<1x256x32xf32>
    %1 = vector.shape_cast %0 : vector<1x256x32xf32> to vector<256x32xf32>
    %c0_2 = arith.constant 0 : index
    %c0_3 = arith.constant 0 : index
    %2 = vector.load %arg2[%c0_2, %c0_3] : memref<32x128xf32, #tpu.memory_space<vmem>>, vector<32x128xf32>
    %cst = arith.constant dense<0.000000e+00> : vector<256x128xf32>
    %3 = tpu.matmul %1, %2, %cst {dimension_numbers = #tpu.dot_dimension_numbers<[1], [0], [0], [1], [0, 0, 1, 1], [], []>} : vector<256x32xf32>, vector<32x128xf32>, vector<256x128xf32> -> vector<256x128xf32>
    %cst_4 = arith.constant 0.000000e+00 : f32
    %4 = vector.broadcast %cst_4 : f32 to vector<16x128xf32>
    %c0_5 = arith.constant 0 : index
    %c0_6 = arith.constant 0 : index
    %c0_7 = arith.constant 0 : index
    %5 = vector.load %arg6[%c0_5, %c0_6, %c0_7] : memref<18x16x128xf32, #tpu.memory_space<vmem>>, vector<1x16x128xf32>
    %6 = vector.shape_cast %5 : vector<1x16x128xf32> to vector<16x128xf32>
    %7 = vector.shape_cast %4 : vector<16x128xf32> to vector<1x16x128xf32>
    tpu.vector_store %arg6[%c0_5, %c0_6, %c0_7], %7 {strides = array<i32>} : memref<18x16x128xf32, #tpu.memory_space<vmem>>, vector<1x16x128xf32>,
    %cst_8 = arith.constant 0.000000e+00 : f32
    %8 = vector.broadcast %cst_8 : f32 to vector<16x128xf32>
    %c17 = arith.constant 17 : index
    %c0_9 = arith.constant 0 : index
    %c0_10 = arith.constant 0 : index
    %9 = vector.load %arg6[%c17, %c0_9, %c0_10] : memref<18x16x128xf32, #tpu.memory_space<vmem>>, vector<1x16x128xf32>
    %10 = vector.shape_cast %9 : vector<1x16x128xf32> to vector<16x128xf32>
    %11 = vector.shape_cast %8 : vector<16x128xf32> to vector<1x16x128xf32>
    tpu.vector_store %arg6[%c17, %c0_9, %c0_10], %11 {strides = array<i32>} : memref<18x16x128xf32, #tpu.memory_space<vmem>>, vector<1x16x128xf32>,
    %12 = vector.shape_cast %3 : vector<256x128xf32> to vector<16x16x128xf32>
    %c1 = arith.constant 1 : index
    %c0_11 = arith.constant 0 : index
    %c0_12 = arith.constant 0 : index
    %13 = vector.load %arg6[%c1, %c0_11, %c0_12] : memref<18x16x128xf32, #tpu.memory_space<vmem>>, vector<16x16x128xf32>
    tpu.vector_store %arg6[%c1, %c0_11, %c0_12], %12 {strides = array<i32>} : memref<18x16x128xf32, #tpu.memory_space<vmem>>, vector<16x16x128xf32>,
    %c0_13 = arith.constant 0 : index
    %c0_14 = arith.constant 0 : index
    %14 = vector.load %arg3[%c0_13, %c0_14] : memref<9x128xf32, #tpu.memory_space<vmem>>, vector<9x128xf32>
    %15 = vector.extract_strided_slice %14 {offsets = [0, 0], sizes = [1, 128], strides = [1, 1]} : vector<9x128xf32> to vector<1x128xf32>
    %16 = vector.shape_cast %15 : vector<1x128xf32> to vector<128xf32>
    %17 = vector.extract_strided_slice %14 {offsets = [1, 0], sizes = [1, 128], strides = [1, 1]} : vector<9x128xf32> to vector<1x128xf32>
    %18 = vector.shape_cast %17 : vector<1x128xf32> to vector<128xf32>
    %19 = vector.extract_strided_slice %14 {offsets = [2, 0], sizes = [1, 128], strides = [1, 1]} : vector<9x128xf32> to vector<1x128xf32>
    %20 = vector.shape_cast %19 : vector<1x128xf32> to vector<128xf32>
    %21 = vector.extract_strided_slice %14 {offsets = [3, 0], sizes = [1, 128], strides = [1, 1]} : vector<9x128xf32> to vector<1x128xf32>
    %22 = vector.shape_cast %21 : vector<1x128xf32> to vector<128xf32>
    %23 = vector.extract_strided_slice %14 {offsets = [4, 0], sizes = [1, 128], strides = [1, 1]} : vector<9x128xf32> to vector<1x128xf32>
    %24 = vector.shape_cast %23 : vector<1x128xf32> to vector<128xf32>
    %25 = vector.extract_strided_slice %14 {offsets = [5, 0], sizes = [1, 128], strides = [1, 1]} : vector<9x128xf32> to vector<1x128xf32>
    %26 = vector.shape_cast %25 : vector<1x128xf32> to vector<128xf32>
    %27 = vector.extract_strided_slice %14 {offsets = [6, 0], sizes = [1, 128], strides = [1, 1]} : vector<9x128xf32> to vector<1x128xf32>
    %28 = vector.shape_cast %27 : vector<1x128xf32> to vector<128xf32>
    %29 = vector.extract_strided_slice %14 {offsets = [7, 0], sizes = [1, 128], strides = [1, 1]} : vector<9x128xf32> to vector<1x128xf32>
    %30 = vector.shape_cast %29 : vector<1x128xf32> to vector<128xf32>
    %31 = vector.extract_strided_slice %14 {offsets = [8, 0], sizes = [1, 128], strides = [1, 1]} : vector<9x128xf32> to vector<1x128xf32>
    %32 = vector.shape_cast %31 : vector<1x128xf32> to vector<128xf32>
    %c0_15 = arith.constant 0 : index
    %c0_16 = arith.constant 0 : index
    %33 = vector.load %arg4[%c0_15, %c0_16] : memref<1x128xf32, #tpu.memory_space<vmem>>, vector<1x128xf32>
    %34 = tpu.iota {dimensions = array<i32: 0>} : vector<16x1xi32>
    %c1_i32 = arith.constant 1 : i32
    %35 = vector.broadcast %c1_i32 : i32 to vector<16x1xi32>
    %36 = arith.cmpi sge, %34, %35 : vector<16x1xi32>
    %c14_i32 = arith.constant 14 : i32
    %37 = vector.broadcast %c14_i32 : i32 to vector<16x1xi32>
    %38 = arith.cmpi sle, %34, %37 : vector<16x1xi32>
    %c0_i32 = arith.constant 0 : i32
    %c2_i32 = arith.constant 2 : i32
    %39 = arith.addi %c0_i32, %c2_i32 : i32
    %c1_i32_17 = arith.constant 1 : i32
    scf.for %arg7 = %c0_i32 to %39 step %c1_i32_17  : i32 {
      %c1_i32_19 = arith.constant 1 : i32
      %40 = arith.muli %arg7, %c1_i32_19 : i32
      %c0_i32_20 = arith.constant 0 : i32
      %41 = arith.addi %c0_i32_20, %40 : i32
      %c8_i32 = arith.constant 8 : i32
      %42 = arith.muli %41, %c8_i32 : i32
      %43 = tpu.assume_multiple %42, 8 : i32
      %44 = arith.index_cast %43 : i32 to index
      %c0_21 = arith.constant 0 : index
      %c0_22 = arith.constant 0 : index
      %45 = vector.load %arg6[%44, %c0_21, %c0_22] : memref<18x16x128xf32, #tpu.memory_space<vmem>>, vector<8x16x128xf32>
      %c1_i32_23 = arith.constant 1 : i32
      %46 = arith.addi %43, %c1_i32_23 : i32
      %47 = arith.index_cast %46 : i32 to index
      %c0_24 = arith.constant 0 : index
      %c0_25 = arith.constant 0 : index
      %48 = vector.load %arg6[%47, %c0_24, %c0_25] : memref<18x16x128xf32, #tpu.memory_space<vmem>>, vector<8x16x128xf32>
      %c2_i32_26 = arith.constant 2 : i32
      %49 = arith.addi %43, %c2_i32_26 : i32
      %50 = arith.index_cast %49 : i32 to index
      %c0_27 = arith.constant 0 : index
      %c0_28 = arith.constant 0 : index
      %51 = vector.load %arg6[%50, %c0_27, %c0_28] : memref<18x16x128xf32, #tpu.memory_space<vmem>>, vector<8x16x128xf32>
      %52 = vector.shape_cast %16 : vector<128xf32> to vector<1x1x128xf32>
      %53 = vector.broadcast %52 : vector<1x1x128xf32> to vector<8x16x128xf32>
      %54 = arith.mulf %45, %53 : vector<8x16x128xf32>
      %55 = vector.shape_cast %22 : vector<128xf32> to vector<1x1x128xf32>
      %56 = vector.broadcast %55 : vector<1x1x128xf32> to vector<8x16x128xf32>
      %57 = arith.mulf %48, %56 : vector<8x16x128xf32>
      %58 = arith.addf %54, %57 : vector<8x16x128xf32>
      %59 = vector.shape_cast %28 : vector<128xf32> to vector<1x1x128xf32>
      %60 = vector.broadcast %59 : vector<1x1x128xf32> to vector<8x16x128xf32>
      %61 = arith.mulf %51, %60 : vector<8x16x128xf32>
      %62 = arith.addf %58, %61 : vector<8x16x128xf32>
      %63 = vector.shape_cast %18 : vector<128xf32> to vector<1x1x128xf32>
      %64 = vector.broadcast %63 : vector<1x1x128xf32> to vector<8x16x128xf32>
      %65 = arith.mulf %45, %64 : vector<8x16x128xf32>
      %66 = vector.shape_cast %33 : vector<1x128xf32> to vector<1x1x128xf32>
      %67 = vector.broadcast %66 : vector<1x1x128xf32> to vector<8x16x128xf32>
      %68 = arith.addf %67, %65 : vector<8x16x128xf32>
      %69 = vector.shape_cast %24 : vector<128xf32> to vector<1x1x128xf32>
      %70 = vector.broadcast %69 : vector<1x1x128xf32> to vector<8x16x128xf32>
      %71 = arith.mulf %48, %70 : vector<8x16x128xf32>
      %72 = arith.addf %68, %71 : vector<8x16x128xf32>
      %73 = vector.shape_cast %30 : vector<128xf32> to vector<1x1x128xf32>
      %74 = vector.broadcast %73 : vector<1x1x128xf32> to vector<8x16x128xf32>
      %75 = arith.mulf %51, %74 : vector<8x16x128xf32>
      %76 = arith.addf %72, %75 : vector<8x16x128xf32>
      %77 = vector.shape_cast %20 : vector<128xf32> to vector<1x1x128xf32>
      %78 = vector.broadcast %77 : vector<1x1x128xf32> to vector<8x16x128xf32>
      %79 = arith.mulf %45, %78 : vector<8x16x128xf32>
      %80 = vector.shape_cast %26 : vector<128xf32> to vector<1x1x128xf32>
      %81 = vector.broadcast %80 : vector<1x1x128xf32> to vector<8x16x128xf32>
      %82 = arith.mulf %48, %81 : vector<8x16x128xf32>
      %83 = arith.addf %79, %82 : vector<8x16x128xf32>
      %84 = vector.shape_cast %32 : vector<128xf32> to vector<1x1x128xf32>
      %85 = vector.broadcast %84 : vector<1x1x128xf32> to vector<8x16x128xf32>
      %86 = arith.mulf %51, %85 : vector<8x16x128xf32>
      %87 = arith.addf %83, %86 : vector<8x16x128xf32>
      %c1_i32_29 = arith.constant 1 : i32
      %88 = tpu.dynamic_rotate %62 by %c1_i32_29 dim 1 : vector<8x16x128xf32>, i32 -> vector<8x16x128xf32>
      %c15_i32 = arith.constant 15 : i32
      %89 = tpu.dynamic_rotate %87 by %c15_i32 dim 1 : vector<8x16x128xf32>, i32 -> vector<8x16x128xf32>
      %cst_30 = arith.constant 0.000000e+00 : f32
      %90 = vector.shape_cast %36 : vector<16x1xi1> to vector<1x16x1xi1>
      %91 = vector.broadcast %90 : vector<1x16x1xi1> to vector<8x16x128xi1>
      %92 = vector.broadcast %cst_30 : f32 to vector<8x16x128xf32>
      %93 = arith.select %91, %88, %92 : vector<8x16x128xi1>, vector<8x16x128xf32>
      %94 = arith.addf %76, %93 : vector<8x16x128xf32>
      %cst_31 = arith.constant 0.000000e+00 : f32
      %95 = vector.shape_cast %38 : vector<16x1xi1> to vector<1x16x1xi1>
      %96 = vector.broadcast %95 : vector<1x16x1xi1> to vector<8x16x128xi1>
      %97 = vector.broadcast %cst_31 : f32 to vector<8x16x128xf32>
      %98 = arith.select %96, %89, %97 : vector<8x16x128xi1>, vector<8x16x128xf32>
      %99 = arith.addf %94, %98 : vector<8x16x128xf32>
      %cst_32 = arith.constant 0.000000e+00 : f32
      %100 = vector.broadcast %cst_32 : f32 to vector<8x16x128xf32>
      %101 = arith.maximumf %99, %100 : vector<8x16x128xf32>
      %c0_33 = arith.constant 0 : index
      %102 = arith.index_cast %43 : i32 to index
      %c0_34 = arith.constant 0 : index
      %c0_35 = arith.constant 0 : index
      %103 = vector.load %arg5[%c0_33, %102, %c0_34, %c0_35] : memref<1x16x16x128xf32, #tpu.memory_space<vmem>>, vector<1x8x16x128xf32>
      %104 = vector.shape_cast %103 : vector<1x8x16x128xf32> to vector<8x16x128xf32>
      %105 = vector.shape_cast %101 : vector<8x16x128xf32> to vector<1x8x16x128xf32>
      tpu.vector_store %arg5[%c0_33, %102, %c0_34, %c0_35], %105 {strides = array<i32>} : memref<1x16x16x128xf32, #tpu.memory_space<vmem>>, vector<1x8x16x128xf32>,
    }
    %c2_i32_18 = arith.constant 2 : i32
    return
  }
  func.func @transform_0(%arg0: i32) -> (i32, i32, i32) {
    %c0_i32 = arith.constant 0 : i32
    %c0_i32_0 = arith.constant 0 : i32
    %c0_i32_1 = arith.constant 0 : i32
    return %arg0, %c0_i32, %c0_i32_0 : i32, i32, i32
  }
  func.func @transform_1(%arg0: i32) -> (i32, i32) {
    %c0_i32 = arith.constant 0 : i32
    %c0_i32_0 = arith.constant 0 : i32
    %c0_i32_1 = arith.constant 0 : i32
    return %c0_i32, %c0_i32_0 : i32, i32
  }
  func.func @transform_2(%arg0: i32) -> (i32, i32) {
    %c0_i32 = arith.constant 0 : i32
    %c0_i32_0 = arith.constant 0 : i32
    %c0_i32_1 = arith.constant 0 : i32
    return %c0_i32, %c0_i32_0 : i32, i32
  }
  func.func @transform_3(%arg0: i32) -> (i32, i32) {
    %c0_i32 = arith.constant 0 : i32
    %c0_i32_0 = arith.constant 0 : i32
    %c0_i32_1 = arith.constant 0 : i32
    return %c0_i32, %c0_i32_0 : i32, i32
  }
  func.func @transform_4(%arg0: i32) -> (i32, i32, i32, i32) {
    %c0_i32 = arith.constant 0 : i32
    %c0_i32_0 = arith.constant 0 : i32
    %c0_i32_1 = arith.constant 0 : i32
    %c0_i32_2 = arith.constant 0 : i32
    return %arg0, %c0_i32, %c0_i32_0, %c0_i32_1 : i32, i32, i32, i32
  }
}

</mosaic_0001>

<llo_original>
// kernel: tpu_custom_call.1
$region0: #{tpu_custom_call.1}
  #allocation0 [shape = 'u32[]', space=smem, size = 0x4, offset = 0x4, fixed_abs, tag = 'smem constant byte address 0x4 - core index']
  #allocation1 [shape = 'u32[144,128]{1,0:T(1,128)}', space=vmem, size = 0x12000, scoped, tag = 'internal scratch']
  #allocation2 [shape = 'f32[18,16,128]{2,1,0:T(8,128)}', space=vmem, size = 0x24000, scoped, tag = 'scratch operand']
  %s0 = inlined_call_operand.vmem [shape: f32[2,256,32], index: 0, kind: input, shape index: {}]
  %s1 = inlined_call_operand.vmem [shape: f32[32,128], index: 1, kind: input, shape index: {}]
  %s2 = inlined_call_operand.vmem [shape: f32[9,128], index: 2, kind: input, shape index: {}]
  %s3 = inlined_call_operand.vmem [shape: f32[1,128], index: 3, kind: input, shape index: {}]
  %s4 = inlined_call_operand.hbm [shape: f32[2,16,16,128], index: 4, kind: output, shape index: {}]
  %s5 = sld [smem:[#allocation0]]
  $region56: #{tpu_custom_call.1} parent=0
    _
  %s7 = ssub.s32 1, %s5
  %s8 = scalar_select 0, %s7, %s5
  $region1: #{tpu_custom_call.1} parent=0
    #allocation3 [shape = 'u8[262144]{0}', space=vmem, size = 0x40000, scoped, tag = 'output window, operand 0']
    #allocation4 [shape = 's32[2]{0}', space=sflag, size = 0x8, scoped, tag = 'scoped memory for tpu_custom_call.1']
    %9 = vsyncpa [#allocation4], 0
    %s10 = scalar_lea.sflag [#allocation4], 1
    %11 = vsyncpa %s10, 0
    loop: start=0, step=1, limit=4
    $region2: #{tpu_custom_call.1} parent=1 // loop_pre_header
      _
    $region3: #{tpu_custom_call.1} parent=1 // loop_header
      %s13 = sphi 0, %s17
      %p14 = scmp.ge.s32.totalorder %s13, 4
      %s23 = sphi 0, %s25
      %s26 = sphi 0, %s23
      %s27 = sphi 0, %s26
      %s43 = sphi 0, %s27
      %s47 = sphi 0, %s47
      %s49 = sphi 0, %s47
      %s50 = sphi 0, %s49
      %s64 = sphi 0, %s50
      %s68 = sphi 0, %s68
      %s70 = sphi 0, %s68
      %s71 = sphi 0, %s70
      %s85 = sphi 0, %s71
      %s89 = sphi 0, %s89
      %s91 = sphi 0, %s89
      %s92 = sphi 0, %s91
      %s106 = sphi 0, %s92
      %s112 = sphi 0, %s114
      %s115 = sphi 0, %s112
      %s116 = sphi 0, %s115
      %s132 = sphi 0, %s116
    $region4: #{tpu_custom_call.1} parent=1 // loop_header_branch
      %16 = sbr.rel (%p14) target = $region8
    $region5: #{tpu_custom_call.1} parent=1 // loop_body
      %s18 = ssub.s32 %s13, 1
      %s19 = ssub.s32 %s13, 2
      %s20 = sadd.s32 %s13, 1
      %s21 = ssub.s32 %s13, %s20
      %p22 = scmp.eq.s32.totalorder %s21, 0
      %s24 = sadd.s32 %s23, 1
      %s25 = scalar_select %p22, %s23, %s24
      %p28 = pneg %p22
      %p29 = scmp.eq.s32.totalorder %s13, 1
      %p30 = por %p28, %p29
      %p31 = scmp.ne.s32.totalorder %s23, %s26
      %p32 = scmp.eq.s32.totalorder %s13, 0
      %p33 = por %p31, %p32
      %p34 = scmp.ne.s32.totalorder %s23, %s26
      %p35 = scmp.eq.s32.totalorder %s18, 1
      %p36 = por %p34, %p35
      %p37 = scmp.ne.s32.totalorder %s26, %s27
      %p38 = scmp.eq.s32.totalorder %s18, 0
      %p39 = por %p37, %p38
      %p40 = scmp.ne.s32.totalorder %s26, %s27
      %p41 = scmp.eq.s32.totalorder %s19, 1
      %p42 = por %p40, %p41
      %p44 = scmp.ne.s32.totalorder %s27, %s43
      %p45 = scmp.eq.s32.totalorder %s19, 0
      %p46 = por %p44, %p45
      %s48 = sadd.s32 %s47, 1
      %p51 = scmp.eq.s32.totalorder %s13, 1
      %p52 = scmp.ne.s32.totalorder %s47, %s49
      %p53 = scmp.eq.s32.totalorder %s13, 0
      %p54 = por %p52, %p53
      %p55 = scmp.ne.s32.totalorder %s47, %s49
      %p56 = scmp.eq.s32.totalorder %s18, 1
      %p57 = por %p55, %p56
      %p58 = scmp.ne.s32.totalorder %s49, %s50
      %p59 = scmp.eq.s32.totalorder %s18, 0
      %p60 = por %p58, %p59
      %p61 = scmp.ne.s32.totalorder %s49, %s50
      %p62 = scmp.eq.s32.totalorder %s19, 1
      %p63 = por %p61, %p62
      %p65 = scmp.ne.s32.totalorder %s50, %s64
      %p66 = scmp.eq.s32.totalorder %s19, 0
      %p67 = por %p65, %p66
      %s69 = sadd.s32 %s68, 1
      %p72 = scmp.eq.s32.totalorder %s13, 1
      %p73 = scmp.ne.s32.totalorder %s68, %s70
      %p74 = scmp.eq.s32.totalorder %s13, 0
      %p75 = por %p73, %p74
      %p76 = scmp.ne.s32.totalorder %s68, %s70
      %p77 = scmp.eq.s32.totalorder %s18, 1
      %p78 = por %p76, %p77
      %p79 = scmp.ne.s32.totalorder %s70, %s71
      %p80 = scmp.eq.s32.totalorder %s18, 0
      %p81 = por %p79, %p80
      %p82 = scmp.ne.s32.totalorder %s70, %s71
      %p83 = scmp.eq.s32.totalorder %s19, 1
      %p84 = por %p82, %p83
      %p86 = scmp.ne.s32.totalorder %s71, %s85
      %p87 = scmp.eq.s32.totalorder %s19, 0
      %p88 = por %p86, %p87
      %s90 = sadd.s32 %s89, 1
      %p93 = scmp.eq.s32.totalorder %s13, 1
      %p94 = scmp.ne.s32.totalorder %s89, %s91
      %p95 = scmp.eq.s32.totalorder %s13, 0
      %p96 = por %p94, %p95
      %p97 = scmp.ne.s32.totalorder %s89, %s91
      %p98 = scmp.eq.s32.totalorder %s18, 1
      %p99 = por %p97, %p98
      %p100 = scmp.ne.s32.totalorder %s91, %s92
      %p101 = scmp.eq.s32.totalorder %s18, 0
      %p102 = por %p100, %p101
      %p103 = scmp.ne.s32.totalorder %s91, %s92
      %p104 = scmp.eq.s32.totalorder %s19, 1
      %p105 = por %p103, %p104
      %p107 = scmp.ne.s32.totalorder %s92, %s106
      %p108 = scmp.eq.s32.totalorder %s19, 0
      %p109 = por %p107, %p108
      %s110 = ssub.s32 %s13, %s20
      %p111 = scmp.eq.s32.totalorder %s110, 0
      %s113 = sadd.s32 %s112, 1
      %s114 = scalar_select %p111, %s112, %s113
      %p117 = pneg %p111
      %p118 = scmp.eq.s32.totalorder %s13, 1
      %p119 = por %p117, %p118
      %p120 = scmp.ne.s32.totalorder %s112, %s115
      %p121 = scmp.eq.s32.totalorder %s13, 0
      %p122 = por %p120, %p121
      %p123 = scmp.ne.s32.totalorder %s112, %s115
      %p124 = scmp.eq.s32.totalorder %s18, 1
      %p125 = por %p123, %p124
      %p126 = scmp.ne.s32.totalorder %s115, %s116
      %p127 = scmp.eq.s32.totalorder %s18, 0
      %p128 = por %p126, %p127
      %p129 = scmp.ne.s32.totalorder %s115, %s116
      %p130 = scmp.eq.s32.totalorder %s19, 1
      %p131 = por %p129, %p130
      %p133 = scmp.ne.s32.totalorder %s116, %s132
      %p134 = scmp.eq.s32.totalorder %s19, 0
      %p135 = por %p133, %p134
      %p136 = scmp.le.s32.totalorder 1, %s13
      %p137 = scmp.lt.s32.totalorder %s13, 3
      %p138 = pnand %p136, %p137
      %p139 = pneg %p138
      // Predicated region
      $region9: #{tpu_custom_call.1} parent=5 // pred_check
        _
      $region10: #{tpu_custom_call.1} parent=5 // pred_check_branch
        %141 = sbr.rel (%p138) target = $region12
      $region11: #{tpu_custom_call.1} parent=5 // pred_region
        %s142 = ssub.s32 %s13, 1
        // Predicated region
        $region13: #{tpu_custom_call.1} parent=11 // pred_check
          %p143 = pneg %p60
        $region14: #{tpu_custom_call.1} parent=11 // pred_check_branch
          %145 = sbr.rel (%p143) target = $region16
        $region15: #{tpu_custom_call.1} parent=11 // pred_region
          _
        $region16: #{tpu_custom_call.1} parent=11 // pred_fallthru
          _
        // Predicated region
        $region17: #{tpu_custom_call.1} parent=11 // pred_check
          %p146 = pneg %p81
        $region18: #{tpu_custom_call.1} parent=11 // pred_check_branch
          %148 = sbr.rel (%p146) target = $region20
        $region19: #{tpu_custom_call.1} parent=11 // pred_region
          _
        $region20: #{tpu_custom_call.1} parent=11 // pred_fallthru
          _
        // Predicated region
        $region21: #{tpu_custom_call.1} parent=11 // pred_check
          %p149 = pneg %p102
        $region22: #{tpu_custom_call.1} parent=11 // pred_check_branch
          %151 = sbr.rel (%p149) target = $region24
        $region23: #{tpu_custom_call.1} parent=11 // pred_region
          _
        $region24: #{tpu_custom_call.1} parent=11 // pred_fallthru
          _
      $region12: #{tpu_custom_call.1} parent=5 // pred_fallthru
        _
      %p152 = scmp.lt.s32.totalorder %s13, 2
      // Predicated region
      $region25: #{tpu_custom_call.1} parent=5 // pred_check
        %p153 = pneg %p152
      $region26: #{tpu_custom_call.1} parent=5 // pred_check_branch
        %155 = sbr.rel (%p153) target = $region28
      $region27: #{tpu_custom_call.1} parent=5 // pred_region
        // Predicated region
        $region29: #{tpu_custom_call.1} parent=27 // pred_check
          %p156 = pneg %p33
        $region30: #{tpu_custom_call.1} parent=27 // pred_check_branch
          %158 = sbr.rel (%p156) target = $region32
        $region31: #{tpu_custom_call.1} parent=27 // pred_region
          %p159 = scmp.lt.s32.totalorder %s13, 1
          %s160 = scalar_select %p159, %s13, 1
          %s161 = smul.addr %s160, 32
          %s162 = smul.addr %s161, 8
          %s163 = scalar_lea.vmem %s0, %s162
        $region32: #{tpu_custom_call.1} parent=27 // pred_fallthru
          _
      $region28: #{tpu_custom_call.1} parent=5 // pred_fallthru
        _
      %p164 = scmp.le.s32.totalorder 1, %s13
      %p165 = scmp.lt.s32.totalorder %s13, 3
      %p166 = pnand %p164, %p165
      %p167 = pneg %p166
      // Predicated region
      $region33: #{tpu_custom_call.1} parent=5 // pred_check
        _
      $region34: #{tpu_custom_call.1} parent=5 // pred_check_branch
        %169 = sbr.rel (%p166) target = $region36
      $region35: #{tpu_custom_call.1} parent=5 // pred_region
        %s170 = ssub.s32 %s13, 1
        %p171 = scmp.lt.s32.totalorder %s18, 1
        %s172 = scalar_select %p171, %s18, 1
        %s173 = smul.addr %s172, 32
        %s174 = smul.addr %s173, 8
        %s175 = scalar_lea.vmem %s0, %s174
        %p176 = pneg %p39
        %p177 = pneg %p36
        %p178 = pneg %p60
        %p179 = pneg %p57
        %p180 = pneg %p81
        %p181 = pneg %p78
        %p182 = pneg %p102
        %p183 = pneg %p99
        %p184 = pneg %p128
        %p185 = pneg %p125
        %s186 = sand.u32 %s115, 1
        %s187 = scalar_lea.sflag [#allocation4], %s186
        %s188 = sand.u32 %s115, 1
        %s189 = smul.addr %s188, 256
        %s190 = scalar_lea.vmem [#allocation3], %s189
        %p191 = scmp.lt.s32.totalorder %s18, 1
        %s192 = scalar_select %p191, %s18, 1
        %s193 = smul.addr %s192, 32
        %s194 = smul.addr %s193, 8
        %s195 = scalar_lea.vmem %s0, %s194
        %v196 = vld [vmem:[%s195] sm:$0xff]
        %v197 = vld [vmem:[%s195 + $0x8] sm:$0xff]
        %v198 = vld [vmem:[%s195 + $0x10] sm:$0xff]
        %v199 = vld [vmem:[%s195 + $0x18] sm:$0xff]
        %v200 = vld [vmem:[%s195 + $0x20] sm:$0xff]
        %v201 = vld [vmem:[%s195 + $0x28] sm:$0xff]
        %v202 = vld [vmem:[%s195 + $0x30] sm:$0xff]
        %v203 = vld [vmem:[%s195 + $0x38] sm:$0xff]
        %v204 = vld [vmem:[%s195 + $0x40] sm:$0xff]
        %v205 = vld [vmem:[%s195 + $0x48] sm:$0xff]
        %v206 = vld [vmem:[%s195 + $0x50] sm:$0xff]
        %v207 = vld [vmem:[%s195 + $0x58] sm:$0xff]
        %v208 = vld [vmem:[%s195 + $0x60] sm:$0xff]
        %v209 = vld [vmem:[%s195 + $0x68] sm:$0xff]
        %v210 = vld [vmem:[%s195 + $0x70] sm:$0xff]
        %v211 = vld [vmem:[%s195 + $0x78] sm:$0xff]
        %v212 = vld [vmem:[%s195 + $0x80] sm:$0xff]
        %v213 = vld [vmem:[%s195 + $0x88] sm:$0xff]
        %v214 = vld [vmem:[%s195 + $0x90] sm:$0xff]
        %v215 = vld [vmem:[%s195 + $0x98] sm:$0xff]
        %v216 = vld [vmem:[%s195 + $0xa0] sm:$0xff]
        %v217 = vld [vmem:[%s195 + $0xa8] sm:$0xff]
        %v218 = vld [vmem:[%s195 + $0xb0] sm:$0xff]
        %v219 = vld [vmem:[%s195 + $0xb8] sm:$0xff]
        %v220 = vld [vmem:[%s195 + $0xc0] sm:$0xff]
        %v221 = vld [vmem:[%s195 + $0xc8] sm:$0xff]
        %v222 = vld [vmem:[%s195 + $0xd0] sm:$0xff]
        %v223 = vld [vmem:[%s195 + $0xd8] sm:$0xff]
        %v224 = vld [vmem:[%s195 + $0xe0] sm:$0xff]
        %v225 = vld [vmem:[%s195 + $0xe8] sm:$0xff]
        %v226 = vld [vmem:[%s195 + $0xf0] sm:$0xff]
        %v227 = vld [vmem:[%s195 + $0xf8] sm:$0xff]
        %v228 = vld [vmem:[%s1] sm:$0xff]
        %v229 = vld [vmem:[%s1 + $0x8] sm:$0xff]
        %v230 = vld [vmem:[%s1 + $0x10] sm:$0xff]
        %v231 = vld [vmem:[%s1 + $0x18] sm:$0xff]
        %vm232 = vcmask 261120
        %v234 = vsel %vm232, %v196, 0
        %v237 = vsel %vm232, %v197, 0
        %v240 = vsel %vm232, %v198, 0
        %v243 = vsel %vm232, %v199, 0
        %v246 = vsel %vm232, %v200, 0
        %v249 = vsel %vm232, %v201, 0
        %v252 = vsel %vm232, %v202, 0
        %v255 = vsel %vm232, %v203, 0
        %v258 = vsel %vm232, %v204, 0
        %v261 = vsel %vm232, %v205, 0
        %v264 = vsel %vm232, %v206, 0
        %v267 = vsel %vm232, %v207, 0
        %v270 = vsel %vm232, %v208, 0
        %v273 = vsel %vm232, %v209, 0
        %v276 = vsel %vm232, %v210, 0
        %v279 = vsel %vm232, %v211, 0
        %v282 = vsel %vm232, %v212, 0
        %v285 = vsel %vm232, %v213, 0
        %v288 = vsel %vm232, %v214, 0
        %v291 = vsel %vm232, %v215, 0
        %v294 = vsel %vm232, %v216, 0
        %v297 = vsel %vm232, %v217, 0
        %v300 = vsel %vm232, %v218, 0
        %v303 = vsel %vm232, %v219, 0
        %v306 = vsel %vm232, %v220, 0
        %v309 = vsel %vm232, %v221, 0
        %v312 = vsel %vm232, %v222, 0
        %v315 = vsel %vm232, %v223, 0
        %v318 = vsel %vm232, %v224, 0
        %v321 = vsel %vm232, %v225, 0
        %v324 = vsel %vm232, %v226, 0
        %v327 = vsel %vm232, %v227, 0
        %329 = vmatprep.subr.mxu0 0.0
        %330 = vmatpush1.msra.mxu0 %v228
        %331 = vmatprep.subr.mxu0 0.0
        %332 = vmatpush1.msra.mxu0 %v229
        %333 = vmatprep.subr.mxu0 0.0
        %334 = vmatpush1.msra.mxu0 %v230
        %335 = vmatprep.subr.mxu0 0.0
        %336 = vmatpush1.msra.mxu0 %v231
        %337 = vmatprep.subr.mxu0 0.0
        %338 = vmatpush1.msra.mxu0 0.0
        %339 = vmatprep.subr.mxu0 0.0
        %340 = vmatpush1.msra.mxu0 0.0
        %341 = vmatprep.subr.mxu0 0.0
        %342 = vmatpush1.msra.mxu0 0.0
        %343 = vmatprep.subr.mxu0 0.0
        %344 = vmatpush1.msra.mxu0 0.0
        %345 = vmatprep.subr.mxu0 0.0
        %346 = vmatpush1.msra.mxu0 0.0
        %347 = vmatprep.subr.mxu0 0.0
        %348 = vmatpush1.msra.mxu0 0.0
        %349 = vmatprep.subr.mxu0 0.0
        %350 = vmatpush1.msra.mxu0 0.0
        %351 = vmatprep.subr.mxu0 0.0
        %352 = vmatpush1.msra.mxu0 0.0
        %353 = vmatprep.subr.mxu0 0.0
        %354 = vmatpush1.msra.mxu0 0.0
        %355 = vmatprep.subr.mxu0 0.0
        %356 = vmatpush1.msra.mxu0 0.0
        %357 = vmatprep.subr.mxu0 0.0
        %358 = vmatpush1.msra.mxu0 0.0
        %359 = vmatprep.subr.mxu0 0.0
        %360 = vmatpush1.msra.mxu0 0.0
        %361 = vmatprep.subr.mxu0 0.0
        %362 = vmatpush1.msra.mxu0 0.0
        %363 = vmatprep.subr.mxu0 0.0
        %364 = vmatpush1.msra.mxu0 0.0
        %365 = vmatprep.subr.mxu0 0.0
        %366 = vmatpush1.msra.mxu0 0.0
        %367 = vmatprep.subr.mxu0 0.0
        %368 = vmatpush1.msra.mxu0 0.0
        %369 = vmatprep.subr.mxu0 0.0
        %370 = vmatpush1.msra.mxu0 0.0
        %371 = vmatprep.subr.mxu0 0.0
        %372 = vmatpush1.msra.mxu0 0.0
        %373 = vmatprep.subr.mxu0 0.0
        %374 = vmatpush1.msra.mxu0 0.0
        %375 = vmatprep.subr.mxu0 0.0
        %376 = vmatpush1.msra.mxu0 0.0
        %377 = vmatprep.subr.mxu0 0.0
        %378 = vmatpush1.msra.mxu0 0.0
        %379 = vmatprep.subr.mxu0 0.0
        %380 = vmatpush1.msra.mxu0 0.0
        %381 = vmatprep.subr.mxu0 0.0
        %382 = vmatpush1.msra.mxu0 0.0
        %383 = vmatprep.subr.mxu0 0.0
        %384 = vmatpush1.msra.mxu0 0.0
        %385 = vmatprep.subr.mxu0 0.0
        %386 = vmatpush1.msra.mxu0 0.0
        %387 = vmatprep.subr.mxu0 0.0
        %388 = vmatpush1.msra.mxu0 0.0
        %389 = vmatprep.subr.mxu0 0.0
        %390 = vmatpush1.msra.mxu0 0.0
        %391 = vmatprep.subr.mxu0 0.0
        %392 = vmatpush1.msra.mxu0 0.0
        %393 = vmatprep.mubr.f32.mxu0 0.0
        %394 = vmatmul.mubr.f32.gmra.mrb[0].mxu0 %v234
        %v395 = vpop.f32.mrb[0].mxu0
        %v396 = vadd.f32 0.0, %v395
        %v397 = vpop.f32.mrb[0].mxu0
        %398 = vmatprep.mubr.f32.mxu0 0.0
        %399 = vmatmul.mubr.f32.gmra.mrb[0].mxu0 %v237
        %v400 = vpop.f32.mrb[0].mxu0
        %v401 = vadd.f32 0.0, %v400
        %v402 = vpop.f32.mrb[0].mxu0
        %403 = vmatprep.mubr.f32.mxu0 0.0
        %404 = vmatmul.mubr.f32.gmra.mrb[0].mxu0 %v240
        %v405 = vpop.f32.mrb[0].mxu0
        %v406 = vadd.f32 0.0, %v405
        %v407 = vpop.f32.mrb[0].mxu0
        %408 = vmatprep.mubr.f32.mxu0 0.0
        %409 = vmatmul.mubr.f32.gmra.mrb[0].mxu0 %v243
        %v410 = vpop.f32.mrb[0].mxu0
        %v411 = vadd.f32 0.0, %v410
        %v412 = vpop.f32.mrb[0].mxu0
        %413 = vmatprep.mubr.f32.mxu0 0.0
        %414 = vmatmul.mubr.f32.gmra.mrb[0].mxu0 %v246
        %v415 = vpop.f32.mrb[0].mxu0
        %v416 = vadd.f32 0.0, %v415
        %v417 = vpop.f32.mrb[0].mxu0
        %418 = vmatprep.mubr.f32.mxu0 0.0
        %419 = vmatmul.mubr.f32.gmra.mrb[0].mxu0 %v249
        %v420 = vpop.f32.mrb[0].mxu0
        %v421 = vadd.f32 0.0, %v420
        %v422 = vpop.f32.mrb[0].mxu0
        %423 = vmatprep.mubr.f32.mxu0 0.0
        %424 = vmatmul.mubr.f32.gmra.mrb[0].mxu0 %v252
        %v425 = vpop.f32.mrb[0].mxu0
        %v426 = vadd.f32 0.0, %v425
        %v427 = vpop.f32.mrb[0].mxu0
        %428 = vmatprep.mubr.f32.mxu0 0.0
        %429 = vmatmul.mubr.f32.gmra.mrb[0].mxu0 %v255
        %v430 = vpop.f32.mrb[0].mxu0
        %v431 = vadd.f32 0.0, %v430
        %v432 = vpop.f32.mrb[0].mxu0
        %433 = vmatprep.mubr.f32.mxu0 0.0
        %434 = vmatmul.mubr.f32.gmra.mrb[0].mxu0 %v258
        %v435 = vpop.f32.mrb[0].mxu0
        %v436 = vadd.f32 0.0, %v435
        %v437 = vpop.f32.mrb[0].mxu0
        %438 = vmatprep.mubr.f32.mxu0 0.0
        %439 = vmatmul.mubr.f32.gmra.mrb[0].mxu0 %v261
        %v440 = vpop.f32.mrb[0].mxu0
        %v441 = vadd.f32 0.0, %v440
        %v442 = vpop.f32.mrb[0].mxu0
        %443 = vmatprep.mubr.f32.mxu0 0.0
        %444 = vmatmul.mubr.f32.gmra.mrb[0].mxu0 %v264
        %v445 = vpop.f32.mrb[0].mxu0
        %v446 = vadd.f32 0.0, %v445
        %v447 = vpop.f32.mrb[0].mxu0
        %448 = vmatprep.mubr.f32.mxu0 0.0
        %449 = vmatmul.mubr.f32.gmra.mrb[0].mxu0 %v267
        %v450 = vpop.f32.mrb[0].mxu0
        %v451 = vadd.f32 0.0, %v450
        %v452 = vpop.f32.mrb[0].mxu0
        %453 = vmatprep.mubr.f32.mxu0 0.0
        %454 = vmatmul.mubr.f32.gmra.mrb[0].mxu0 %v270
        %v455 = vpop.f32.mrb[0].mxu0
        %v456 = vadd.f32 0.0, %v455
        %v457 = vpop.f32.mrb[0].mxu0
        %458 = vmatprep.mubr.f32.mxu0 0.0
        %459 = vmatmul.mubr.f32.gmra.mrb[0].mxu0 %v273
        %v460 = vpop.f32.mrb[0].mxu0
        %v461 = vadd.f32 0.0, %v460
        %v462 = vpop.f32.mrb[0].mxu0
        %463 = vmatprep.mubr.f32.mxu0 0.0
        %464 = vmatmul.mubr.f32.gmra.mrb[0].mxu0 %v276
        %v465 = vpop.f32.mrb[0].mxu0
        %v466 = vadd.f32 0.0, %v465
        %v467 = vpop.f32.mrb[0].mxu0
        %468 = vmatprep.mubr.f32.mxu0 0.0
        %469 = vmatmul.mubr.f32.gmra.mrb[0].mxu0 %v279
        %v470 = vpop.f32.mrb[0].mxu0
        %v471 = vadd.f32 0.0, %v470
        %v472 = vpop.f32.mrb[0].mxu0
        %473 = vmatprep.mubr.f32.mxu0 0.0
        %474 = vmatmul.mubr.f32.gmra.mrb[0].mxu0 %v282
        %v475 = vpop.f32.mrb[0].mxu0
        %v476 = vadd.f32 0.0, %v475
        %v477 = vpop.f32.mrb[0].mxu0
        %478 = vmatprep.mubr.f32.mxu0 0.0
        %479 = vmatmul.mubr.f32.gmra.mrb[0].mxu0 %v285
        %v480 = vpop.f32.mrb[0].mxu0
        %v481 = vadd.f32 0.0, %v480
        %v482 = vpop.f32.mrb[0].mxu0
        %483 = vmatprep.mubr.f32.mxu0 0.0
        %484 = vmatmul.mubr.f32.gmra.mrb[0].mxu0 %v288
        %v485 = vpop.f32.mrb[0].mxu0
        %v486 = vadd.f32 0.0, %v485
        %v487 = vpop.f32.mrb[0].mxu0
        %488 = vmatprep.mubr.f32.mxu0 0.0
        %489 = vmatmul.mubr.f32.gmra.mrb[0].mxu0 %v291
        %v490 = vpop.f32.mrb[0].mxu0
        %v491 = vadd.f32 0.0, %v490
        %v492 = vpop.f32.mrb[0].mxu0
        %493 = vmatprep.mubr.f32.mxu0 0.0
        %494 = vmatmul.mubr.f32.gmra.mrb[0].mxu0 %v294
        %v495 = vpop.f32.mrb[0].mxu0
        %v496 = vadd.f32 0.0, %v495
        %v497 = vpop.f32.mrb[0].mxu0
        %498 = vmatprep.mubr.f32.mxu0 0.0
        %499 = vmatmul.mubr.f32.gmra.mrb[0].mxu0 %v297
        %v500 = vpop.f32.mrb[0].mxu0
        %v501 = vadd.f32 0.0, %v500
        %v502 = vpop.f32.mrb[0].mxu0
        %503 = vmatprep.mubr.f32.mxu0 0.0
        %504 = vmatmul.mubr.f32.gmra.mrb[0].mxu0 %v300
        %v505 = vpop.f32.mrb[0].mxu0
        %v506 = vadd.f32 0.0, %v505
        %v507 = vpop.f32.mrb[0].mxu0
        %508 = vmatprep.mubr.f32.mxu0 0.0
        %509 = vmatmul.mubr.f32.gmra.mrb[0].mxu0 %v303
        %v510 = vpop.f32.mrb[0].mxu0
        %v511 = vadd.f32 0.0, %v510
        %v512 = vpop.f32.mrb[0].mxu0
        %513 = vmatprep.mubr.f32.mxu0 0.0
        %514 = vmatmul.mubr.f32.gmra.mrb[0].mxu0 %v306
        %v515 = vpop.f32.mrb[0].mxu0
        %v516 = vadd.f32 0.0, %v515
        %v517 = vpop.f32.mrb[0].mxu0
        %518 = vmatprep.mubr.f32.mxu0 0.0
        %519 = vmatmul.mubr.f32.gmra.mrb[0].mxu0 %v309
        %v520 = vpop.f32.mrb[0].mxu0
        %v521 = vadd.f32 0.0, %v520
        %v522 = vpop.f32.mrb[0].mxu0
        %523 = vmatprep.mubr.f32.mxu0 0.0
        %524 = vmatmul.mubr.f32.gmra.mrb[0].mxu0 %v312
        %v525 = vpop.f32.mrb[0].mxu0
        %v526 = vadd.f32 0.0, %v525
        %v527 = vpop.f32.mrb[0].mxu0
        %528 = vmatprep.mubr.f32.mxu0 0.0
        %529 = vmatmul.mubr.f32.gmra.mrb[0].mxu0 %v315
        %v530 = vpop.f32.mrb[0].mxu0
        %v531 = vadd.f32 0.0, %v530
        %v532 = vpop.f32.mrb[0].mxu0
        %533 = vmatprep.mubr.f32.mxu0 0.0
        %534 = vmatmul.mubr.f32.gmra.mrb[0].mxu0 %v318
        %v535 = vpop.f32.mrb[0].mxu0
        %v536 = vadd.f32 0.0, %v535
        %v537 = vpop.f32.mrb[0].mxu0
        %538 = vmatprep.mubr.f32.mxu0 0.0
        %539 = vmatmul.mubr.f32.gmra.mrb[0].mxu0 %v321
        %v540 = vpop.f32.mrb[0].mxu0
        %v541 = vadd.f32 0.0, %v540
        %v542 = vpop.f32.mrb[0].mxu0
        %543 = vmatprep.mubr.f32.mxu0 0.0
        %544 = vmatmul.mubr.f32.gmra.mrb[0].mxu0 %v324
        %v545 = vpop.f32.mrb[0].mxu0
        %v546 = vadd.f32 0.0, %v545
        %v547 = vpop.f32.mrb[0].mxu0
        %548 = vmatprep.mubr.f32.mxu0 0.0
        %549 = vmatmul.mubr.f32.gmra.mrb[0].mxu0 %v327
        %v550 = vpop.f32.mrb[0].mxu0
        %v551 = vadd.f32 0.0, %v550
        %v552 = vpop.f32.mrb[0].mxu0
        %553 = vdwg.mxu0
        %554 = vst [vmem:[#allocation2] sm:$0xff] 0.0
        %555 = vst [vmem:[#allocation2 + $0x8] sm:$0xff] 0.0
        %s556 = scalar_lea.vmem [#allocation2], 272
        %557 = vst [vmem:[%s556] sm:$0xff] 0.0
        %558 = vst [vmem:[%s556 + $0x8] sm:$0xff] 0.0
        %s559 = scalar_lea.vmem [#allocation2], 16
        %560 = vst [vmem:[%s559] sm:$0xff] %v396
        %561 = vst [vmem:[%s559 + $0x8] sm:$0xff] %v401
        %562 = vst [vmem:[%s559 + $0x10] sm:$0xff] %v406
        %563 = vst [vmem:[%s559 + $0x18] sm:$0xff] %v411
        %564 = vst [vmem:[%s559 + $0x20] sm:$0xff] %v416
        %565 = vst [vmem:[%s559 + $0x28] sm:$0xff] %v421
        %566 = vst [vmem:[%s559 + $0x30] sm:$0xff] %v426
        %567 = vst [vmem:[%s559 + $0x38] sm:$0xff] %v431
        %568 = vst [vmem:[%s559 + $0x40] sm:$0xff] %v436
        %569 = vst [vmem:[%s559 + $0x48] sm:$0xff] %v441
        %570 = vst [vmem:[%s559 + $0x50] sm:$0xff] %v446
        %571 = vst [vmem:[%s559 + $0x58] sm:$0xff] %v451
        %572 = vst [vmem:[%s559 + $0x60] sm:$0xff] %v456
        %573 = vst [vmem:[%s559 + $0x68] sm:$0xff] %v461
        %574 = vst [vmem:[%s559 + $0x70] sm:$0xff] %v466
        %575 = vst [vmem:[%s559 + $0x78] sm:$0xff] %v471
        %576 = vst [vmem:[%s559 + $0x80] sm:$0xff] %v476
        %577 = vst [vmem:[%s559 + $0x88] sm:$0xff] %v481
        %578 = vst [vmem:[%s559 + $0x90] sm:$0xff] %v486
        %579 = vst [vmem:[%s559 + $0x98] sm:$0xff] %v491
        %580 = vst [vmem:[%s559 + $0xa0] sm:$0xff] %v496
        %581 = vst [vmem:[%s559 + $0xa8] sm:$0xff] %v501
        %582 = vst [vmem:[%s559 + $0xb0] sm:$0xff] %v506
        %583 = vst [vmem:[%s559 + $0xb8] sm:$0xff] %v511
        %584 = vst [vmem:[%s559 + $0xc0] sm:$0xff] %v516
        %585 = vst [vmem:[%s559 + $0xc8] sm:$0xff] %v521
        %586 = vst [vmem:[%s559 + $0xd0] sm:$0xff] %v526
        %587 = vst [vmem:[%s559 + $0xd8] sm:$0xff] %v531
        %588 = vst [vmem:[%s559 + $0xe0] sm:$0xff] %v536
        %589 = vst [vmem:[%s559 + $0xe8] sm:$0xff] %v541
        %590 = vst [vmem:[%s559 + $0xf0] sm:$0xff] %v546
        %591 = vst [vmem:[%s559 + $0xf8] sm:$0xff] %v551
        %v592 = vld [vmem:[%s2] sm:$0xff]
        %v593 = vld [vmem:[%s2 + $0x8] sm:$0x1]
        %v594 = vld [vmem:[%s3] sm:$0x1]
        %v595 = vlaneseq
        %v596 = vshrl.u32 %v595, 7
        %v597 = vadd.s32 %v596, 8
        %vm598 = vcmp.ge.s32.totalorder %v596, 1
        %vm599 = vcmp.ge.s32.totalorder %v597, 1
        %vm600 = vcmp.le.s32.totalorder %v596, 14
        %vm601 = vcmp.le.s32.totalorder %v597, 14
        loop: start=0, step=1, limit=2
        $region37: #{tpu_custom_call.1} parent=35 // loop_pre_header
          _
        $region38: #{tpu_custom_call.1} parent=35 // loop_header
          %s603 = sphi 0, %s607
          %p604 = scmp.ge.s32.totalorder %s603, 2
        $region39: #{tpu_custom_call.1} parent=35 // loop_header_branch
          %606 = sbr.rel (%p604) target = $region43
        $region40: #{tpu_custom_call.1} parent=35 // loop_body
          %s608 = smul.u32 %s603, 8
          %s609 = smul.u32 %s608, 16
          %s610 = scalar_lea.vmem [#allocation2], %s609
          %v611 = vld [vmem:[%s610] sm:$0xff]
          %v612 = vld [vmem:[%s610 + $0x8] sm:$0xff]
          %v613 = vld [vmem:[%s610 + $0x10] sm:$0xff]
          %v614 = vld [vmem:[%s610 + $0x18] sm:$0xff]
          %v615 = vld [vmem:[%s610 + $0x20] sm:$0xff]
          %v616 = vld [vmem:[%s610 + $0x28] sm:$0xff]
          %v617 = vld [vmem:[%s610 + $0x30] sm:$0xff]
          %v618 = vld [vmem:[%s610 + $0x38] sm:$0xff]
          %v619 = vld [vmem:[%s610 + $0x40] sm:$0xff]
          %v620 = vld [vmem:[%s610 + $0x48] sm:$0xff]
          %v621 = vld [vmem:[%s610 + $0x50] sm:$0xff]
          %v622 = vld [vmem:[%s610 + $0x58] sm:$0xff]
          %v623 = vld [vmem:[%s610 + $0x60] sm:$0xff]
          %v624 = vld [vmem:[%s610 + $0x68] sm:$0xff]
          %v625 = vld [vmem:[%s610 + $0x70] sm:$0xff]
          %v626 = vld [vmem:[%s610 + $0x78] sm:$0xff]
          %s627 = sadd.s32 %s608, 1
          %s628 = smul.u32 %s627, 16
          %s629 = scalar_lea.vmem [#allocation2], %s628
          %v630 = vld [vmem:[%s629] sm:$0xff]
          %v631 = vld [vmem:[%s629 + $0x8] sm:$0xff]
          %v632 = vld [vmem:[%s629 + $0x10] sm:$0xff]
          %v633 = vld [vmem:[%s629 + $0x18] sm:$0xff]
          %v634 = vld [vmem:[%s629 + $0x20] sm:$0xff]
          %v635 = vld [vmem:[%s629 + $0x28] sm:$0xff]
          %v636 = vld [vmem:[%s629 + $0x30] sm:$0xff]
          %v637 = vld [vmem:[%s629 + $0x38] sm:$0xff]
          %v638 = vld [vmem:[%s629 + $0x40] sm:$0xff]
          %v639 = vld [vmem:[%s629 + $0x48] sm:$0xff]
          %v640 = vld [vmem:[%s629 + $0x50] sm:$0xff]
          %v641 = vld [vmem:[%s629 + $0x58] sm:$0xff]
          %v642 = vld [vmem:[%s629 + $0x60] sm:$0xff]
          %v643 = vld [vmem:[%s629 + $0x68] sm:$0xff]
          %v644 = vld [vmem:[%s629 + $0x70] sm:$0xff]
          %v645 = vld [vmem:[%s629 + $0x78] sm:$0xff]
          %s646 = sadd.s32 %s608, 2
          %s647 = smul.u32 %s646, 16
          %s648 = scalar_lea.vmem [#allocation2], %s647
          %v649 = vld [vmem:[%s648] sm:$0xff]
          %v650 = vld [vmem:[%s648 + $0x8] sm:$0xff]
          %v651 = vld [vmem:[%s648 + $0x10] sm:$0xff]
          %v652 = vld [vmem:[%s648 + $0x18] sm:$0xff]
          %v653 = vld [vmem:[%s648 + $0x20] sm:$0xff]
          %v654 = vld [vmem:[%s648 + $0x28] sm:$0xff]
          %v655 = vld [vmem:[%s648 + $0x30] sm:$0xff]
          %v656 = vld [vmem:[%s648 + $0x38] sm:$0xff]
          %v657 = vld [vmem:[%s648 + $0x40] sm:$0xff]
          %v658 = vld [vmem:[%s648 + $0x48] sm:$0xff]
          %v659 = vld [vmem:[%s648 + $0x50] sm:$0xff]
          %v660 = vld [vmem:[%s648 + $0x58] sm:$0xff]
          %v661 = vld [vmem:[%s648 + $0x60] sm:$0xff]
          %v662 = vld [vmem:[%s648 + $0x68] sm:$0xff]
          %v663 = vld [vmem:[%s648 + $0x70] sm:$0xff]
          %v664 = vld [vmem:[%s648 + $0x78] sm:$0xff]
          %v665 = vlaneseq
          %v666 = vshrl.u32 %v665, 7
          %v667 = vsub.s32 0, %v666
          %v668 = vrot.slane %v592, %v667
          %v669 = vmul.f32 %v611, %v668
          %v670 = vmul.f32 %v612, %v668
          %v671 = vmul.f32 %v613, %v668
          %v672 = vmul.f32 %v614, %v668
          %v673 = vmul.f32 %v615, %v668
          %v674 = vmul.f32 %v616, %v668
          %v675 = vmul.f32 %v617, %v668
          %v676 = vmul.f32 %v618, %v668
          %v677 = vmul.f32 %v619, %v668
          %v678 = vmul.f32 %v620, %v668
          %v679 = vmul.f32 %v621, %v668
          %v680 = vmul.f32 %v622, %v668
          %v681 = vmul.f32 %v623, %v668
          %v682 = vmul.f32 %v624, %v668
          %v683 = vmul.f32 %v625, %v668
          %v684 = vmul.f32 %v626, %v668
          %v685 = vlaneseq
          %v686 = vshrl.u32 %v685, 7
          %v687 = vsub.s32 3, %v686
          %v688 = vrot.slane %v592, %v687
          %v689 = vmul.f32 %v630, %v688
          %v690 = vmul.f32 %v631, %v688
          %v691 = vmul.f32 %v632, %v688
          %v692 = vmul.f32 %v633, %v688
          %v693 = vmul.f32 %v634, %v688
          %v694 = vmul.f32 %v635, %v688
          %v695 = vmul.f32 %v636, %v688
          %v696 = vmul.f32 %v637, %v688
          %v697 = vmul.f32 %v638, %v688
          %v698 = vmul.f32 %v639, %v688
          %v699 = vmul.f32 %v640, %v688
          %v700 = vmul.f32 %v641, %v688
          %v701 = vmul.f32 %v642, %v688
          %v702 = vmul.f32 %v643, %v688
          %v703 = vmul.f32 %v644, %v688
          %v704 = vmul.f32 %v645, %v688
          %v705 = vadd.f32 %v669, %v689
          %v706 = vadd.f32 %v670, %v690
          %v707 = vadd.f32 %v671, %v691
          %v708 = vadd.f32 %v672, %v692
          %v709 = vadd.f32 %v673, %v693
          %v710 = vadd.f32 %v674, %v694
          %v711 = vadd.f32 %v675, %v695
          %v712 = vadd.f32 %v676, %v696
          %v713 = vadd.f32 %v677, %v697
          %v714 = vadd.f32 %v678, %v698
          %v715 = vadd.f32 %v679, %v699
          %v716 = vadd.f32 %v680, %v700
          %v717 = vadd.f32 %v681, %v701
          %v718 = vadd.f32 %v682, %v702
          %v719 = vadd.f32 %v683, %v703
          %v720 = vadd.f32 %v684, %v704
          %v721 = vlaneseq
          %v722 = vshrl.u32 %v721, 7
          %v723 = vsub.s32 6, %v722
          %v724 = vrot.slane %v592, %v723
          %v725 = vmul.f32 %v649, %v724
          %v726 = vmul.f32 %v650, %v724
          %v727 = vmul.f32 %v651, %v724
          %v728 = vmul.f32 %v652, %v724
          %v729 = vmul.f32 %v653, %v724
          %v730 = vmul.f32 %v654, %v724
          %v731 = vmul.f32 %v655, %v724
          %v732 = vmul.f32 %v656, %v724
          %v733 = vmul.f32 %v657, %v724
          %v734 = vmul.f32 %v658, %v724
          %v735 = vmul.f32 %v659, %v724
          %v736 = vmul.f32 %v660, %v724
          %v737 = vmul.f32 %v661, %v724
          %v738 = vmul.f32 %v662, %v724
          %v739 = vmul.f32 %v663, %v724
          %v740 = vmul.f32 %v664, %v724
          %v741 = vadd.f32 %v705, %v725
          %v742 = vadd.f32 %v706, %v726
          %v743 = vadd.f32 %v707, %v727
          %v744 = vadd.f32 %v708, %v728
          %v745 = vadd.f32 %v709, %v729
          %v746 = vadd.f32 %v710, %v730
          %v747 = vadd.f32 %v711, %v731
          %v748 = vadd.f32 %v712, %v732
          %v749 = vadd.f32 %v713, %v733
          %v750 = vadd.f32 %v714, %v734
          %v751 = vadd.f32 %v715, %v735
          %v752 = vadd.f32 %v716, %v736
          %v753 = vadd.f32 %v717, %v737
          %v754 = vadd.f32 %v718, %v738
          %v755 = vadd.f32 %v719, %v739
          %v756 = vadd.f32 %v720, %v740
          %v757 = vlaneseq
          %v758 = vshrl.u32 %v757, 7
          %v759 = vsub.s32 1, %v758
          %v760 = vrot.slane %v592, %v759
          %v761 = vmul.f32 %v611, %v760
          %v762 = vmul.f32 %v612, %v760
          %v763 = vmul.f32 %v613, %v760
          %v764 = vmul.f32 %v614, %v760
          %v765 = vmul.f32 %v615, %v760
          %v766 = vmul.f32 %v616, %v760
          %v767 = vmul.f32 %v617, %v760
          %v768 = vmul.f32 %v618, %v760
          %v769 = vmul.f32 %v619, %v760
          %v770 = vmul.f32 %v620, %v760
          %v771 = vmul.f32 %v621, %v760
          %v772 = vmul.f32 %v622, %v760
          %v773 = vmul.f32 %v623, %v760
          %v774 = vmul.f32 %v624, %v760
          %v775 = vmul.f32 %v625, %v760
          %v776 = vmul.f32 %v626, %v760
          %v778 = vlaneseq
          %v779 = vshrl.u32 %v778, 7
          %v780 = vsub.s32 0, %v779
          %v781 = vrot.slane %v594, %v780
          %v783 = vadd.f32 %v781, %v761
          %v784 = vadd.f32 %v781, %v762
          %v785 = vadd.f32 %v781, %v763
          %v786 = vadd.f32 %v781, %v764
          %v787 = vadd.f32 %v781, %v765
          %v788 = vadd.f32 %v781, %v766
          %v789 = vadd.f32 %v781, %v767
          %v790 = vadd.f32 %v781, %v768
          %v791 = vadd.f32 %v781, %v769
          %v792 = vadd.f32 %v781, %v770
          %v793 = vadd.f32 %v781, %v771
          %v794 = vadd.f32 %v781, %v772
          %v795 = vadd.f32 %v781, %v773
          %v796 = vadd.f32 %v781, %v774
          %v797 = vadd.f32 %v781, %v775
          %v798 = vadd.f32 %v781, %v776
          %v799 = vlaneseq
          %v800 = vshrl.u32 %v799, 7
          %v801 = vsub.s32 4, %v800
          %v802 = vrot.slane %v592, %v801
          %v803 = vmul.f32 %v630, %v802
          %v804 = vmul.f32 %v631, %v802
          %v805 = vmul.f32 %v632, %v802
          %v806 = vmul.f32 %v633, %v802
          %v807 = vmul.f32 %v634, %v802
          %v808 = vmul.f32 %v635, %v802
          %v809 = vmul.f32 %v636, %v802
          %v810 = vmul.f32 %v637, %v802
          %v811 = vmul.f32 %v638, %v802
          %v812 = vmul.f32 %v639, %v802
          %v813 = vmul.f32 %v640, %v802
          %v814 = vmul.f32 %v641, %v802
          %v815 = vmul.f32 %v642, %v802
          %v816 = vmul.f32 %v643, %v802
          %v817 = vmul.f32 %v644, %v802
          %v818 = vmul.f32 %v645, %v802
          %v819 = vadd.f32 %v783, %v803
          %v820 = vadd.f32 %v784, %v804
          %v821 = vadd.f32 %v785, %v805
          %v822 = vadd.f32 %v786, %v806
          %v823 = vadd.f32 %v787, %v807
          %v824 = vadd.f32 %v788, %v808
          %v825 = vadd.f32 %v789, %v809
          %v826 = vadd.f32 %v790, %v810
          %v827 = vadd.f32 %v791, %v811
          %v828 = vadd.f32 %v792, %v812
          %v829 = vadd.f32 %v793, %v813
          %v830 = vadd.f32 %v794, %v814
          %v831 = vadd.f32 %v795, %v815
          %v832 = vadd.f32 %v796, %v816
          %v833 = vadd.f32 %v797, %v817
          %v834 = vadd.f32 %v798, %v818
          %v835 = vlaneseq
          %v836 = vshrl.u32 %v835, 7
          %v837 = vsub.s32 7, %v836
          %v838 = vrot.slane %v592, %v837
          %v839 = vmul.f32 %v649, %v838
          %v840 = vmul.f32 %v650, %v838
          %v841 = vmul.f32 %v651, %v838
          %v842 = vmul.f32 %v652, %v838
          %v843 = vmul.f32 %v653, %v838
          %v844 = vmul.f32 %v654, %v838
          %v845 = vmul.f32 %v655, %v838
          %v846 = vmul.f32 %v656, %v838
          %v847 = vmul.f32 %v657, %v838
          %v848 = vmul.f32 %v658, %v838
          %v849 = vmul.f32 %v659, %v838
          %v850 = vmul.f32 %v660, %v838
          %v851 = vmul.f32 %v661, %v838
          %v852 = vmul.f32 %v662, %v838
          %v853 = vmul.f32 %v663, %v838
          %v854 = vmul.f32 %v664, %v838
          %v855 = vadd.f32 %v819, %v839
          %v856 = vadd.f32 %v820, %v840
          %v857 = vadd.f32 %v821, %v841
          %v858 = vadd.f32 %v822, %v842
          %v859 = vadd.f32 %v823, %v843
          %v860 = vadd.f32 %v824, %v844
          %v861 = vadd.f32 %v825, %v845
          %v862 = vadd.f32 %v826, %v846
          %v863 = vadd.f32 %v827, %v847
          %v864 = vadd.f32 %v828, %v848
          %v865 = vadd.f32 %v829, %v849
          %v866 = vadd.f32 %v830, %v850
          %v867 = vadd.f32 %v831, %v851
          %v868 = vadd.f32 %v832, %v852
          %v869 = vadd.f32 %v833, %v853
          %v870 = vadd.f32 %v834, %v854
          %v871 = vlaneseq
          %v872 = vshrl.u32 %v871, 7
          %v873 = vsub.s32 2, %v872
          %v874 = vrot.slane %v592, %v873
          %v875 = vmul.f32 %v611, %v874
          %v876 = vmul.f32 %v612, %v874
          %v877 = vmul.f32 %v613, %v874
          %v878 = vmul.f32 %v614, %v874
          %v879 = vmul.f32 %v615, %v874
          %v880 = vmul.f32 %v616, %v874
          %v881 = vmul.f32 %v617, %v874
          %v882 = vmul.f32 %v618, %v874
          %v883 = vmul.f32 %v619, %v874
          %v884 = vmul.f32 %v620, %v874
          %v885 = vmul.f32 %v621, %v874
          %v886 = vmul.f32 %v622, %v874
          %v887 = vmul.f32 %v623, %v874
          %v888 = vmul.f32 %v624, %v874
          %v889 = vmul.f32 %v625, %v874
          %v890 = vmul.f32 %v626, %v874
          %v891 = vlaneseq
          %v892 = vshrl.u32 %v891, 7
          %v893 = vsub.s32 5, %v892
          %v894 = vrot.slane %v592, %v893
          %v895 = vmul.f32 %v630, %v894
          %v896 = vmul.f32 %v631, %v894
          %v897 = vmul.f32 %v632, %v894
          %v898 = vmul.f32 %v633, %v894
          %v899 = vmul.f32 %v634, %v894
          %v900 = vmul.f32 %v635, %v894
          %v901 = vmul.f32 %v636, %v894
          %v902 = vmul.f32 %v637, %v894
          %v903 = vmul.f32 %v638, %v894
          %v904 = vmul.f32 %v639, %v894
          %v905 = vmul.f32 %v640, %v894
          %v906 = vmul.f32 %v641, %v894
          %v907 = vmul.f32 %v642, %v894
          %v908 = vmul.f32 %v643, %v894
          %v909 = vmul.f32 %v644, %v894
          %v910 = vmul.f32 %v645, %v894
          %v911 = vadd.f32 %v875, %v895
          %v912 = vadd.f32 %v876, %v896
          %v913 = vadd.f32 %v877, %v897
          %v914 = vadd.f32 %v878, %v898
          %v915 = vadd.f32 %v879, %v899
          %v916 = vadd.f32 %v880, %v900
          %v917 = vadd.f32 %v881, %v901
          %v918 = vadd.f32 %v882, %v902
          %v919 = vadd.f32 %v883, %v903
          %v920 = vadd.f32 %v884, %v904
          %v921 = vadd.f32 %v885, %v905
          %v922 = vadd.f32 %v886, %v906
          %v923 = vadd.f32 %v887, %v907
          %v924 = vadd.f32 %v888, %v908
          %v925 = vadd.f32 %v889, %v909
          %v926 = vadd.f32 %v890, %v910
          %v927 = vlaneseq
          %v928 = vshrl.u32 %v927, 7
          %v929 = vsub.s32 0, %v928
          %v930 = vrot.slane %v593, %v929
          %v931 = vmul.f32 %v649, %v930
          %v932 = vmul.f32 %v650, %v930
          %v933 = vmul.f32 %v651, %v930
          %v934 = vmul.f32 %v652, %v930
          %v935 = vmul.f32 %v653, %v930
          %v936 = vmul.f32 %v654, %v930
          %v937 = vmul.f32 %v655, %v930
          %v938 = vmul.f32 %v656, %v930
          %v939 = vmul.f32 %v657, %v930
          %v940 = vmul.f32 %v658, %v930
          %v941 = vmul.f32 %v659, %v930
          %v942 = vmul.f32 %v660, %v930
          %v943 = vmul.f32 %v661, %v930
          %v944 = vmul.f32 %v662, %v930
          %v945 = vmul.f32 %v663, %v930
          %v946 = vmul.f32 %v664, %v930
          %v947 = vadd.f32 %v911, %v931
          %v948 = vadd.f32 %v912, %v932
          %v949 = vadd.f32 %v913, %v933
          %v950 = vadd.f32 %v914, %v934
          %v951 = vadd.f32 %v915, %v935
          %v952 = vadd.f32 %v916, %v936
          %v953 = vadd.f32 %v917, %v937
          %v954 = vadd.f32 %v918, %v938
          %v955 = vadd.f32 %v919, %v939
          %v956 = vadd.f32 %v920, %v940
          %v957 = vadd.f32 %v921, %v941
          %v958 = vadd.f32 %v922, %v942
          %v959 = vadd.f32 %v923, %v943
          %v960 = vadd.f32 %v924, %v944
          %v961 = vadd.f32 %v925, %v945
          %v962 = vadd.f32 %v926, %v946
          %v963 = vrot.slane %v741, 7
          %v964 = vrot.slane %v743, 7
          %v965 = vrot.slane %v745, 7
          %v966 = vrot.slane %v747, 7
          %v967 = vrot.slane %v749, 7
          %v968 = vrot.slane %v751, 7
          %v969 = vrot.slane %v753, 7
          %v970 = vrot.slane %v755, 7
          %v971 = vrot.slane %v742, 7
          %v972 = vrot.slane %v744, 7
          %v973 = vrot.slane %v746, 7
          %v974 = vrot.slane %v748, 7
          %v975 = vrot.slane %v750, 7
          %v976 = vrot.slane %v752, 7
          %v977 = vrot.slane %v754, 7
          %v978 = vrot.slane %v756, 7
          %vm979 = vcmp.lt.s32.totalorder %v596, 1
          %v980 = vsel %vm979, %v963, %v971
          %v981 = vsel %vm979, %v964, %v972
          %v982 = vsel %vm979, %v965, %v973
          %v983 = vsel %vm979, %v966, %v974
          %v984 = vsel %vm979, %v967, %v975
          %v985 = vsel %vm979, %v968, %v976
          %v986 = vsel %vm979, %v969, %v977
          %v987 = vsel %vm979, %v970, %v978
          %v988 = vsel %vm979, %v971, %v963
          %v989 = vsel %vm979, %v972, %v964
          %v990 = vsel %vm979, %v973, %v965
          %v991 = vsel %vm979, %v974, %v966
          %v992 = vsel %vm979, %v975, %v967
          %v993 = vsel %vm979, %v976, %v968
          %v994 = vsel %vm979, %v977, %v969
          %v995 = vsel %vm979, %v978, %v970
          %v996 = vrot.slane %v947, 1
          %v997 = vrot.slane %v949, 1
          %v998 = vrot.slane %v951, 1
          %v999 = vrot.slane %v953, 1
          %v1000 = vrot.slane %v955, 1
          %v1001 = vrot.slane %v957, 1
          %v1002 = vrot.slane %v959, 1
          %v1003 = vrot.slane %v961, 1
          %v1004 = vrot.slane %v948, 1
          %v1005 = vrot.slane %v950, 1
          %v1006 = vrot.slane %v952, 1
          %v1007 = vrot.slane %v954, 1
          %v1008 = vrot.slane %v956, 1
          %v1009 = vrot.slane %v958, 1
          %v1010 = vrot.slane %v960, 1
          %v1011 = vrot.slane %v962, 1
          %vm1012 = vcmp.lt.s32.totalorder %v596, 7
          %v1013 = vsel %vm1012, %v996, %v1004
          %v1014 = vsel %vm1012, %v997, %v1005
          %v1015 = vsel %vm1012, %v998, %v1006
          %v1016 = vsel %vm1012, %v999, %v1007
          %v1017 = vsel %vm1012, %v1000, %v1008
          %v1018 = vsel %vm1012, %v1001, %v1009
          %v1019 = vsel %vm1012, %v1002, %v1010
          %v1020 = vsel %vm1012, %v1003, %v1011
          %v1021 = vsel %vm1012, %v1004, %v996
          %v1022 = vsel %vm1012, %v1005, %v997
          %v1023 = vsel %vm1012, %v1006, %v998
          %v1024 = vsel %vm1012, %v1007, %v999
          %v1025 = vsel %vm1012, %v1008, %v1000
          %v1026 = vsel %vm1012, %v1009, %v1001
          %v1027 = vsel %vm1012, %v1010, %v1002
          %v1028 = vsel %vm1012, %v1011, %v1003
          %v1029 = vsel %vm598, 1, 0
          %v1030 = vsel %vm599, 1, 0
          %vm1031 = vcmp.eq.s32.totalorder %v1029, 1
          %vm1032 = vcmp.eq.s32.totalorder %v1030, 1
          %v1033 = vsel %vm1031, %v988, 0.0
          %v1034 = vsel %vm1032, %v980, 0.0
          %v1035 = vsel %vm1031, %v989, 0.0
          %v1036 = vsel %vm1032, %v981, 0.0
          %v1037 = vsel %vm1031, %v990, 0.0
          %v1038 = vsel %vm1032, %v982, 0.0
          %v1039 = vsel %vm1031, %v991, 0.0
          %v1040 = vsel %vm1032, %v983, 0.0
          %v1041 = vsel %vm1031, %v992, 0.0
          %v1042 = vsel %vm1032, %v984, 0.0
          %v1043 = vsel %vm1031, %v993, 0.0
          %v1044 = vsel %vm1032, %v985, 0.0
          %v1045 = vsel %vm1031, %v994, 0.0
          %v1046 = vsel %vm1032, %v986, 0.0
          %v1047 = vsel %vm1031, %v995, 0.0
          %v1048 = vsel %vm1032, %v987, 0.0
          %v1049 = vadd.f32 %v855, %v1033
          %v1050 = vadd.f32 %v856, %v1034
          %v1051 = vadd.f32 %v857, %v1035
          %v1052 = vadd.f32 %v858, %v1036
          %v1053 = vadd.f32 %v859, %v1037
          %v1054 = vadd.f32 %v860, %v1038
          %v1055 = vadd.f32 %v861, %v1039
          %v1056 = vadd.f32 %v862, %v1040
          %v1057 = vadd.f32 %v863, %v1041
          %v1058 = vadd.f32 %v864, %v1042
          %v1059 = vadd.f32 %v865, %v1043
          %v1060 = vadd.f32 %v866, %v1044
          %v1061 = vadd.f32 %v867, %v1045
          %v1062 = vadd.f32 %v868, %v1046
          %v1063 = vadd.f32 %v869, %v1047
          %v1064 = vadd.f32 %v870, %v1048
          %v1065 = vsel %vm600, 1, 0
          %v1066 = vsel %vm601, 1, 0
          %vm1067 = vcmp.eq.s32.totalorder %v1065, 1
          %vm1068 = vcmp.eq.s32.totalorder %v1066, 1
          %v1069 = vsel %vm1067, %v1013, 0.0
          %v1070 = vsel %vm1068, %v1021, 0.0
          %v1071 = vsel %vm1067, %v1014, 0.0
          %v1072 = vsel %vm1068, %v1022, 0.0
          %v1073 = vsel %vm1067, %v1015, 0.0
          %v1074 = vsel %vm1068, %v1023, 0.0
          %v1075 = vsel %vm1067, %v1016, 0.0
          %v1076 = vsel %vm1068, %v1024, 0.0
          %v1077 = vsel %vm1067, %v1017, 0.0
          %v1078 = vsel %vm1068, %v1025, 0.0
          %v1079 = vsel %vm1067, %v1018, 0.0
          %v1080 = vsel %vm1068, %v1026, 0.0
          %v1081 = vsel %vm1067, %v1019, 0.0
          %v1082 = vsel %vm1068, %v1027, 0.0
          %v1083 = vsel %vm1067, %v1020, 0.0
          %v1084 = vsel %vm1068, %v1028, 0.0
          %v1085 = vadd.f32 %v1049, %v1069
          %v1086 = vadd.f32 %v1050, %v1070
          %v1087 = vadd.f32 %v1051, %v1071
          %v1088 = vadd.f32 %v1052, %v1072
          %v1089 = vadd.f32 %v1053, %v1073
          %v1090 = vadd.f32 %v1054, %v1074
          %v1091 = vadd.f32 %v1055, %v1075
          %v1092 = vadd.f32 %v1056, %v1076
          %v1093 = vadd.f32 %v1057, %v1077
          %v1094 = vadd.f32 %v1058, %v1078
          %v1095 = vadd.f32 %v1059, %v1079
          %v1096 = vadd.f32 %v1060, %v1080
          %v1097 = vadd.f32 %v1061, %v1081
          %v1098 = vadd.f32 %v1062, %v1082
          %v1099 = vadd.f32 %v1063, %v1083
          %v1100 = vadd.f32 %v1064, %v1084
          %v1101 = vmax.f32 %v1085, 0.0
          %v1102 = vmax.f32 %v1086, 0.0
          %v1103 = vmax.f32 %v1087, 0.0
          %v1104 = vmax.f32 %v1088, 0.0
          %v1105 = vmax.f32 %v1089, 0.0
          %v1106 = vmax.f32 %v1090, 0.0
          %v1107 = vmax.f32 %v1091, 0.0
          %v1108 = vmax.f32 %v1092, 0.0
          %v1109 = vmax.f32 %v1093, 0.0
          %v1110 = vmax.f32 %v1094, 0.0
          %v1111 = vmax.f32 %v1095, 0.0
          %v1112 = vmax.f32 %v1096, 0.0
          %v1113 = vmax.f32 %v1097, 0.0
          %v1114 = vmax.f32 %v1098, 0.0
          %v1115 = vmax.f32 %v1099, 0.0
          %v1116 = vmax.f32 %v1100, 0.0
          %s1117 = scalar_lea.vmem %s190, %s609 [#allocation3]
          %1118 = vst [vmem:[%s1117] sm:$0xff] %v1101
          %1119 = vst [vmem:[%s1117 + $0x8] sm:$0xff] %v1102
          %1120 = vst [vmem:[%s1117 + $0x10] sm:$0xff] %v1103
          %1121 = vst [vmem:[%s1117 + $0x18] sm:$0xff] %v1104
          %1122 = vst [vmem:[%s1117 + $0x20] sm:$0xff] %v1105
          %1123 = vst [vmem:[%s1117 + $0x28] sm:$0xff] %v1106
          %1124 = vst [vmem:[%s1117 + $0x30] sm:$0xff] %v1107
          %1125 = vst [vmem:[%s1117 + $0x38] sm:$0xff] %v1108
          %1126 = vst [vmem:[%s1117 + $0x40] sm:$0xff] %v1109
          %1127 = vst [vmem:[%s1117 + $0x48] sm:$0xff] %v1110
          %1128 = vst [vmem:[%s1117 + $0x50] sm:$0xff] %v1111
          %1129 = vst [vmem:[%s1117 + $0x58] sm:$0xff] %v1112
          %1130 = vst [vmem:[%s1117 + $0x60] sm:$0xff] %v1113
          %1131 = vst [vmem:[%s1117 + $0x68] sm:$0xff] %v1114
          %1132 = vst [vmem:[%s1117 + $0x70] sm:$0xff] %v1115
          %1133 = vst [vmem:[%s1117 + $0x78] sm:$0xff] %v1116
        $region41: #{tpu_custom_call.1} parent=35 // loop_footer
          %s607 = sadd.s32 1, %s603
        $region42: #{tpu_custom_call.1} parent=35 // loop_footer_branch
          %602 = sbr.rel target = $region38
        $region43: #{tpu_custom_call.1} parent=35 // loop_exit
          _
        %s1134 = sand.u32 %s115, 1
        %s1135 = scalar_lea.sflag [#allocation4], %s1134
        %s1136 = sand.u32 %s115, 1
        %s1137 = smul.addr %s1136, 256
        %s1138 = scalar_lea.vmem [#allocation3], %s1137
        // Predicated region
        $region44: #{tpu_custom_call.1} parent=35 // pred_check
          %p1139 = pneg %p125
        $region45: #{tpu_custom_call.1} parent=35 // pred_check_branch
          %1141 = sbr.rel (%p1139) target = $region47
        $region46: #{tpu_custom_call.1} parent=35 // pred_region
          %s1143 = ssub.s32 4096, 4096
          %1144 = vsyncadd %s1135, %s1143
          %s1145 = smul.addr %s18, 32
          %s1146 = smul.addr %s1145, 128
          %s1147 = scalar_lea.hbm %s4, %s1146
          %s1148 = sshll.u32 %s1138, 4
          %s1149 = int_to_ptr.vmem [resolvable:$true] %s1148
          %1154 = dma.vmem_to_hbm [thread:$0]  %s1149, 4096, %s1147, %s1135, 128, 128, 8
        $region47: #{tpu_custom_call.1} parent=35 // pred_fallthru
          _
      $region36: #{tpu_custom_call.1} parent=5 // pred_fallthru
        _
      %p1155 = scmp.le.s32.totalorder 2, %s13
      // Predicated region
      $region48: #{tpu_custom_call.1} parent=5 // pred_check
        %p1156 = pneg %p1155
      $region49: #{tpu_custom_call.1} parent=5 // pred_check_branch
        %1158 = sbr.rel (%p1156) target = $region51
      $region50: #{tpu_custom_call.1} parent=5 // pred_region
        %s1159 = ssub.s32 %s13, 2
        // Predicated region
        $region52: #{tpu_custom_call.1} parent=50 // pred_check
          %p1160 = pneg %p131
        $region53: #{tpu_custom_call.1} parent=50 // pred_check_branch
          %1162 = sbr.rel (%p1160) target = $region55
        $region54: #{tpu_custom_call.1} parent=50 // pred_region
          %s1163 = sand.u32 %s116, 1
          %s1164 = scalar_lea.sflag [#allocation4], %s1163
          %s1165 = sand.u32 %s116, 1
          %s1166 = smul.addr %s1165, 256
          %s1167 = scalar_lea.vmem [#allocation3], %s1166
          %1168 = dma.done %s1164, 4096
        $region55: #{tpu_custom_call.1} parent=50 // pred_fallthru
          _
      $region51: #{tpu_custom_call.1} parent=5 // pred_fallthru
        _
    $region6: #{tpu_custom_call.1} parent=1 // loop_footer
      %s17 = sadd.s32 1, %s13
    $region7: #{tpu_custom_call.1} parent=1 // loop_footer_branch
      %12 = sbr.rel target = $region3
    $region8: #{tpu_custom_call.1} parent=1 // loop_exit
      _
    %1169 = vsyncpa [#allocation4], 1
    %s1170 = scalar_lea.sflag [#allocation4], 1
    %1171 = vsyncpa %s1170, 1

</llo_original>
